<compile_context>
chip_gen: v6e
topology: v6e:2x2x1
jax: 0.10.0
libtpu: 0.0.40
codegen_flags: <defaults>
</compile_context>

<pallas_src>
import jax
import jax.numpy as jnp
from jax.experimental import pallas as pl
from jax.experimental.pallas import tpu as pltpu


def _filter_kernel(x_ref, w_ref, b_ref, o_ref):
    # x_ref: (tile, F)  node-major activation tile (natural producer layout).
    # w_ref: (F, 1)     plane weight, resident in VMEM across all grid steps.
    # b_ref: (1, 1)     plane bias.
    # o_ref: (1, tile)  lane-dense output tile.
    xt = jnp.transpose(x_ref[...])                               # XLU: (F, tile)
    prod = xt * w_ref[...]                                       # VPU broadcast over lanes
    logits = jnp.sum(prod, axis=0, keepdims=True) + b_ref[...]   # XLU sublane reduce -> (1, tile)
    o_ref[...] = jax.nn.sigmoid(logits).astype(o_ref.dtype)      # EUP


def _round_up(n, m):
    return ((n + m - 1) // m) * m


def _plane_filter(x, w, b, *, tile):
    """sigmoid(x @ w + b)[:, 0] for one plane as a single pallas_call."""
    n, f = x.shape
    # Clamp the column tile to the 128-rounded plane size: keeps the output
    # store lane-dense / the input block (8,128)-aligned, and avoids paying DMA
    # for a huge mostly-padding block on small planes.
    tile_p = min(tile, _round_up(n, 128))
    grid = int(pl.cdiv(n, tile_p))
    out = pl.pallas_call(
        _filter_kernel,
        out_shape=jax.ShapeDtypeStruct((1, n), jnp.float32),
        grid=(grid,),
        in_specs=[
            pl.BlockSpec((tile_p, f), lambda i: (i, 0)),  # activations, natural [N, F] layout
            pl.BlockSpec((f, 1), lambda i: (0, 0)),       # weight: same block index -> fetched once
            pl.BlockSpec((1, 1), lambda i: (0, 0)),       # bias
        ],
        out_specs=pl.BlockSpec((1, tile_p), lambda i: (0, i)),
        compiler_params=pltpu.CompilerParams(
            dimension_semantics=("parallel",)),
    )(x, w, b)
    # Boundary blocks are padded by Pallas: out-of-range input columns produce
    # garbage logits that are masked away by the partial output store, so the
    # (1, n) result holds only valid nodes.
    return out[0]


def filter_decoder_forward(x_dict, params, *, tile=8192):
    """Pallas equivalent of FilterDecoder.forward.

    x_dict:  {plane: [N_p, F] float32}
    params:  {plane: (w [F, 1], b [1, 1])}
    returns: {"x_filter": {plane: [N_p] float32}}
    """
    out = {}
    for p, x in x_dict.items():
        n = x.shape[0]
        if n == 0:                                  # empty plane guard
            out[p] = jnp.zeros((0,), jnp.float32)
            continue
        w, b = params[p]
        out[p] = _plane_filter(x, w, b, tile=tile)
    return {"x_filter": out}


def init_filter_decoder_params(key, planes, node_features):
    """Deterministic synthetic init matching nn.Linear(node_features, 1) shapes."""
    params = {}
    bound = 1.0 / jnp.sqrt(jnp.float32(node_features))
    for i, p in enumerate(planes):
        kw, kb = jax.random.split(jax.random.fold_in(key, i))
        w = jax.random.uniform(kw, (node_features, 1), jnp.float32, -bound, bound)
        b = jax.random.uniform(kb, (1, 1), jnp.float32, -bound, bound)
        params[p] = (w, b)
    return params


def _reference_forward(x_dict, params):
    """Pure-JAX reference for correctness checking."""
    return {
        "x_filter": {
            p: jax.nn.sigmoid(x_dict[p] @ params[p][0] + params[p][1])[:, 0]
            for p in x_dict
        }
    }


if __name__ == "__main__":
    planes = ["u", "v", "y"]
    node_features = 32
    # Non-multiples of 128 to exercise the boundary-block masking, plus an
    # empty plane to exercise the N_p == 0 guard.
    n_nodes = {"u": 300, "v": 40, "y": 0}

    key = jax.random.PRNGKey(0)
    params = init_filter_decoder_params(jax.random.fold_in(key, 100),
                                        planes, node_features)

    x_dict = {}
    for i, p in enumerate(planes):
        x_dict[p] = jax.random.normal(
            jax.random.fold_in(key, i), (n_nodes[p], node_features), jnp.float32)

    ref = _reference_forward(x_dict, params)

    # Default (large) tile: each plane runs in a single grid step.
    out_big = jax.block_until_ready(filter_decoder_forward(x_dict, params))
    # Small tile: forces a multi-step grid with a partially out-of-bounds last block.
    out_small = jax.block_until_ready(
        filter_decoder_forward(x_dict, params, tile=128))

    for out in (out_big, out_small):
        for p in planes:
            assert out["x_filter"][p].shape == (n_nodes[p],)
            assert jnp.allclose(out["x_filter"][p], ref["x_filter"][p],
                                atol=1e-5, rtol=1e-5)

    print("KERNEL_OK")
</pallas_src>

<mosaic_0001>
module attributes {stable_mosaic.version = 11 : i64} {
  func.func @_filter_kernel(%arg0: i32, %arg1: memref<384x32xf32, #tpu.memory_space<vmem>>, %arg2: memref<32x1xf32, #tpu.memory_space<vmem>>, %arg3: memref<1x1xf32, #tpu.memory_space<vmem>>, %arg4: memref<1x384xf32, #tpu.memory_space<vmem>>) attributes {dimension_semantics = [#tpu.dimension_semantics<parallel>], iteration_bounds = array<i64: 1>, scalar_prefetch = 0 : i64, scratch_operands = 0 : i64, tpu.core_type = #tpu.core_type<tc>, window_params = [{transform_indices = @transform_0, window_bounds = array<i64: 384, 32>}, {pipeline_mode = #tpu.pipeline_mode<synchronous>, transform_indices = @transform_1, window_bounds = array<i64: 32, 1>}, {pipeline_mode = #tpu.pipeline_mode<synchronous>, transform_indices = @transform_2, window_bounds = array<i64: 1, 1>}, {transform_indices = @transform_3, window_bounds = array<i64: 1, 384>}]} {
    %c0 = arith.constant 0 : index
    %c0_0 = arith.constant 0 : index
    %0 = vector.load %arg1[%c0, %c0_0] : memref<384x32xf32, #tpu.memory_space<vmem>>, vector<384x32xf32>
    %1 = tpu.transpose %0, [1, 0] : vector<384x32xf32> -> vector<32x384xf32>
    %c0_1 = arith.constant 0 : index
    %c0_2 = arith.constant 0 : index
    %2 = vector.load %arg2[%c0_1, %c0_2] : memref<32x1xf32, #tpu.memory_space<vmem>>, vector<32x1xf32>
    %3 = vector.broadcast %2 : vector<32x1xf32> to vector<32x384xf32>
    %4 = arith.mulf %1, %3 : vector<32x384xf32>
    %cst = arith.constant dense<0.000000e+00> : vector<384xf32>
    %5 = vector.multi_reduction <add>, %4, %cst [0] : vector<32x384xf32> to vector<384xf32>
    %6 = vector.shape_cast %5 : vector<384xf32> to vector<1x384xf32>
    %c0_3 = arith.constant 0 : index
    %c0_4 = arith.constant 0 : index
    %7 = vector.load %arg3[%c0_3, %c0_4] : memref<1x1xf32, #tpu.memory_space<vmem>>, vector<1x1xf32>
    %8 = vector.broadcast %7 : vector<1x1xf32> to vector<1x384xf32>
    %9 = arith.addf %6, %8 : vector<1x384xf32>
    %10 = arith.negf %9 : vector<1x384xf32>
    %11 = math.exp %10 : vector<1x384xf32>
    %cst_5 = arith.constant 1.000000e+00 : f32
    %12 = vector.broadcast %cst_5 : f32 to vector<1x384xf32>
    %13 = arith.addf %12, %11 : vector<1x384xf32>
    %14 = arith.divf %12, %13 : vector<1x384xf32>
    %c0_6 = arith.constant 0 : index
    %c0_7 = arith.constant 0 : index
    %15 = vector.load %arg4[%c0_6, %c0_7] : memref<1x384xf32, #tpu.memory_space<vmem>>, vector<1x384xf32>
    tpu.vector_store %arg4[%c0_6, %c0_7], %14 {strides = array<i32>} : memref<1x384xf32, #tpu.memory_space<vmem>>, vector<1x384xf32>,
    return
  }
  func.func @transform_0(%arg0: i32) -> (i32, i32) {
    %c0_i32 = arith.constant 0 : i32
    %c0_i32_0 = arith.constant 0 : i32
    return %arg0, %c0_i32 : i32, i32
  }
  func.func @transform_1(%arg0: i32) -> (i32, i32) {
    %c0_i32 = arith.constant 0 : i32
    %c0_i32_0 = arith.constant 0 : i32
    %c0_i32_1 = arith.constant 0 : i32
    return %c0_i32, %c0_i32_0 : i32, i32
  }
  func.func @transform_2(%arg0: i32) -> (i32, i32) {
    %c0_i32 = arith.constant 0 : i32
    %c0_i32_0 = arith.constant 0 : i32
    %c0_i32_1 = arith.constant 0 : i32
    return %c0_i32, %c0_i32_0 : i32, i32
  }
  func.func @transform_3(%arg0: i32) -> (i32, i32) {
    %c0_i32 = arith.constant 0 : i32
    %c0_i32_0 = arith.constant 0 : i32
    return %c0_i32, %arg0 : i32, i32
  }
}

</mosaic_0001>

<llo_original>
// kernel: tpu_custom_call.1
$region0: #{tpu_custom_call.1}
  #allocation0 [shape = 'u32[]', space=smem, size = 0x4, offset = 0x4, fixed_abs, tag = 'smem constant byte address 0x4 - core index']
  #allocation1 [shape = 'u32[144,128]{1,0:T(1,128)}', space=vmem, size = 0x12000, scoped, tag = 'internal scratch']
  #allocation2 [shape = 'f32[1,1]{1,0:T(1,128)S(1)}', space=vmem, size = 0x200, scoped, tag = 'scoped memory for tpu_custom_call.1']
  %s0 = inlined_call_operand.vmem [shape: f32[300,32], index: 0, kind: input, shape index: {}]
  %s1 = inlined_call_operand.vmem [shape: f32[32,1], index: 1, kind: input, shape index: {}]
  %s2 = inlined_call_operand.<no memory space> [shape: f32[1,1], index: 2, kind: input, shape index: {}]
  %s3 = inlined_call_operand.hbm [shape: f32[1,300], index: 3, kind: output, shape index: {}]
  %s4 = sld [smem:[#allocation0]]
  $region22: #{tpu_custom_call.1} parent=0
    _
  %s6 = ssub.s32 1, %s4
  %s7 = scalar_select 0, %s6, %s4
  %v8 = vstv %s2
  %9 = vst [vmem:[#allocation2] sm:$0x1] %v8
  $region1: #{tpu_custom_call.1} parent=0
    #allocation3 [shape = 'u8[1536]{0}', space=vmem, size = 0x800, scoped, tag = 'output window, operand 0, single buffered']
    #allocation4 [shape = 's32[1]{0}', space=sflag, size = 0x4, scoped, tag = 'scoped memory for tpu_custom_call.1']
    %10 = vsyncpa [#allocation4], 0
    // Predicated region
    $region2: #{tpu_custom_call.1} parent=1 // pred_check
      _
    $region3: #{tpu_custom_call.1} parent=1 // pred_check_branch
      %12 = sbr.rel (0) target = $region5
    $region4: #{tpu_custom_call.1} parent=1 // pred_region
      _
    $region5: #{tpu_custom_call.1} parent=1 // pred_fallthru
      _
    // Predicated region
    $region6: #{tpu_custom_call.1} parent=1 // pred_check
      _
    $region7: #{tpu_custom_call.1} parent=1 // pred_check_branch
      %14 = sbr.rel (0) target = $region9
    $region8: #{tpu_custom_call.1} parent=1 // pred_region
      _
    $region9: #{tpu_custom_call.1} parent=1 // pred_fallthru
      _
    // Predicated region
    $region10: #{tpu_custom_call.1} parent=1 // pred_check
      _
    $region11: #{tpu_custom_call.1} parent=1 // pred_check_branch
      %16 = sbr.rel (0) target = $region13
    $region12: #{tpu_custom_call.1} parent=1 // pred_region
      _
    $region13: #{tpu_custom_call.1} parent=1 // pred_fallthru
      _
    %v17 = vld [vmem:[%s0] sm:$0xff]
    %v18 = vld [vmem:[%s0 + $0x8] sm:$0xff]
    %v19 = vld [vmem:[%s0 + $0x10] sm:$0xff]
    %v20 = vld [vmem:[%s0 + $0x18] sm:$0xff]
    %v21 = vld [vmem:[%s0 + $0x20] sm:$0xff]
    %v22 = vld [vmem:[%s0 + $0x28] sm:$0xff]
    %v23 = vld [vmem:[%s0 + $0x30] sm:$0xff]
    %v24 = vld [vmem:[%s0 + $0x38] sm:$0xff]
    %v25 = vld [vmem:[%s0 + $0x40] sm:$0xff]
    %v26 = vld [vmem:[%s0 + $0x48] sm:$0xff]
    %v27 = vld [vmem:[%s0 + $0x50] sm:$0xff]
    %v28 = vld [vmem:[%s0 + $0x58] sm:$0xff]
    %v29 = vld [vmem:[%s0 + $0x60] sm:$0xff]
    %v30 = vld [vmem:[%s0 + $0x68] sm:$0xff]
    %v31 = vld [vmem:[%s0 + $0x70] sm:$0xff]
    %v32 = vld [vmem:[%s0 + $0x78] sm:$0xff]
    %v33 = vld [vmem:[%s0 + $0x80] sm:$0xff]
    %v34 = vld [vmem:[%s0 + $0x88] sm:$0xff]
    %v35 = vld [vmem:[%s0 + $0x90] sm:$0xff]
    %v36 = vld [vmem:[%s0 + $0x98] sm:$0xff]
    %v37 = vld [vmem:[%s0 + $0xa0] sm:$0xff]
    %v38 = vld [vmem:[%s0 + $0xa8] sm:$0xff]
    %v39 = vld [vmem:[%s0 + $0xb0] sm:$0xff]
    %v40 = vld [vmem:[%s0 + $0xb8] sm:$0xff]
    %v41 = vld [vmem:[%s0 + $0xc0] sm:$0xff]
    %v42 = vld [vmem:[%s0 + $0xc8] sm:$0xff]
    %v43 = vld [vmem:[%s0 + $0xd0] sm:$0xff]
    %v44 = vld [vmem:[%s0 + $0xd8] sm:$0xff]
    %v45 = vld [vmem:[%s0 + $0xe0] sm:$0xff]
    %v46 = vld [vmem:[%s0 + $0xe8] sm:$0xff]
    %v47 = vld [vmem:[%s0 + $0xf0] sm:$0xff]
    %v48 = vld [vmem:[%s0 + $0xf8] sm:$0xff]
    %v49 = vld [vmem:[%s0 + $0x100] sm:$0xff]
    %v50 = vld [vmem:[%s0 + $0x108] sm:$0xff]
    %v51 = vld [vmem:[%s0 + $0x110] sm:$0xff]
    %v52 = vld [vmem:[%s0 + $0x118] sm:$0xff]
    %v53 = vld [vmem:[%s0 + $0x120] sm:$0xff]
    %v54 = vld [vmem:[%s0 + $0x128] sm:$0xff]
    %v55 = vld [vmem:[%s0 + $0x130] sm:$0xff]
    %v56 = vld [vmem:[%s0 + $0x138] sm:$0xff]
    %v57 = vld [vmem:[%s0 + $0x140] sm:$0xff]
    %v58 = vld [vmem:[%s0 + $0x148] sm:$0xff]
    %v59 = vld [vmem:[%s0 + $0x150] sm:$0xff]
    %v60 = vld [vmem:[%s0 + $0x158] sm:$0xff]
    %v61 = vld [vmem:[%s0 + $0x160] sm:$0xff]
    %v62 = vld [vmem:[%s0 + $0x168] sm:$0xff]
    %v63 = vld [vmem:[%s0 + $0x170] sm:$0xff]
    %v64 = vld [vmem:[%s0 + $0x178] sm:$0xff]
    %65 = vxpose.xlu0.b32.start [1/16] %v17, 128
    %66 = vxpose.xlu0.b32.cont [2/16] %v18, 128
    %67 = vxpose.xlu0.b32.cont [3/16] %v19, 128
    %68 = vxpose.xlu0.b32.cont [4/16] %v20, 128
    %69 = vxpose.xlu0.b32.cont [5/16] %v21, 128
    %70 = vxpose.xlu0.b32.cont [6/16] %v22, 128
    %71 = vxpose.xlu0.b32.cont [7/16] %v23, 128
    %72 = vxpose.xlu0.b32.cont [8/16] %v24, 128
    %73 = vxpose.xlu0.b32.cont [9/16] %v25, 128
    %74 = vxpose.xlu0.b32.cont [10/16] %v26, 128
    %75 = vxpose.xlu0.b32.cont [11/16] %v27, 128
    %76 = vxpose.xlu0.b32.cont [12/16] %v28, 128
    %77 = vxpose.xlu0.b32.cont [13/16] %v29, 128
    %78 = vxpose.xlu0.b32.cont [14/16] %v30, 128
    %79 = vxpose.xlu0.b32.cont [15/16] %v31, 128
    %80 = vxpose.xlu0.b32.end [16/16] %v32, 128
    %v81 = vpop.trf.xlu0
    %v82 = vpop.trf.xlu0
    %v83 = vpop.trf.xlu0
    %v84 = vpop.trf.xlu0
    %v85 = vpop.trf.xlu0
    %v86 = vpop.trf.xlu0
    %v87 = vpop.trf.xlu0
    %v88 = vpop.trf.xlu0
    %v89 = vpop.trf.xlu0
    %v90 = vpop.trf.xlu0
    %v91 = vpop.trf.xlu0
    %v92 = vpop.trf.xlu0
    %v93 = vpop.trf.xlu0
    %v94 = vpop.trf.xlu0
    %v95 = vpop.trf.xlu0
    %v96 = vpop.trf.xlu0
    %97 = vxpose.xlu0.b32.start [1/16] %v33, 128
    %98 = vxpose.xlu0.b32.cont [2/16] %v34, 128
    %99 = vxpose.xlu0.b32.cont [3/16] %v35, 128
    %100 = vxpose.xlu0.b32.cont [4/16] %v36, 128
    %101 = vxpose.xlu0.b32.cont [5/16] %v37, 128
    %102 = vxpose.xlu0.b32.cont [6/16] %v38, 128
    %103 = vxpose.xlu0.b32.cont [7/16] %v39, 128
    %104 = vxpose.xlu0.b32.cont [8/16] %v40, 128
    %105 = vxpose.xlu0.b32.cont [9/16] %v41, 128
    %106 = vxpose.xlu0.b32.cont [10/16] %v42, 128
    %107 = vxpose.xlu0.b32.cont [11/16] %v43, 128
    %108 = vxpose.xlu0.b32.cont [12/16] %v44, 128
    %109 = vxpose.xlu0.b32.cont [13/16] %v45, 128
    %110 = vxpose.xlu0.b32.cont [14/16] %v46, 128
    %111 = vxpose.xlu0.b32.cont [15/16] %v47, 128
    %112 = vxpose.xlu0.b32.end [16/16] %v48, 128
    %v113 = vpop.trf.xlu0
    %v114 = vpop.trf.xlu0
    %v115 = vpop.trf.xlu0
    %v116 = vpop.trf.xlu0
    %v117 = vpop.trf.xlu0
    %v118 = vpop.trf.xlu0
    %v119 = vpop.trf.xlu0
    %v120 = vpop.trf.xlu0
    %v121 = vpop.trf.xlu0
    %v122 = vpop.trf.xlu0
    %v123 = vpop.trf.xlu0
    %v124 = vpop.trf.xlu0
    %v125 = vpop.trf.xlu0
    %v126 = vpop.trf.xlu0
    %v127 = vpop.trf.xlu0
    %v128 = vpop.trf.xlu0
    %129 = vxpose.xlu0.b32.start [1/16] %v49, 128
    %130 = vxpose.xlu0.b32.cont [2/16] %v50, 128
    %131 = vxpose.xlu0.b32.cont [3/16] %v51, 128
    %132 = vxpose.xlu0.b32.cont [4/16] %v52, 128
    %133 = vxpose.xlu0.b32.cont [5/16] %v53, 128
    %134 = vxpose.xlu0.b32.cont [6/16] %v54, 128
    %135 = vxpose.xlu0.b32.cont [7/16] %v55, 128
    %136 = vxpose.xlu0.b32.cont [8/16] %v56, 128
    %137 = vxpose.xlu0.b32.cont [9/16] %v57, 128
    %138 = vxpose.xlu0.b32.cont [10/16] %v58, 128
    %139 = vxpose.xlu0.b32.cont [11/16] %v59, 128
    %140 = vxpose.xlu0.b32.cont [12/16] %v60, 128
    %141 = vxpose.xlu0.b32.cont [13/16] %v61, 128
    %142 = vxpose.xlu0.b32.cont [14/16] %v62, 128
    %143 = vxpose.xlu0.b32.cont [15/16] %v63, 128
    %144 = vxpose.xlu0.b32.end [16/16] %v64, 128
    %v145 = vpop.trf.xlu0
    %v146 = vpop.trf.xlu0
    %v147 = vpop.trf.xlu0
    %v148 = vpop.trf.xlu0
    %v149 = vpop.trf.xlu0
    %v150 = vpop.trf.xlu0
    %v151 = vpop.trf.xlu0
    %v152 = vpop.trf.xlu0
    %v153 = vpop.trf.xlu0
    %v154 = vpop.trf.xlu0
    %v155 = vpop.trf.xlu0
    %v156 = vpop.trf.xlu0
    %v157 = vpop.trf.xlu0
    %v158 = vpop.trf.xlu0
    %v159 = vpop.trf.xlu0
    %v160 = vpop.trf.xlu0
    %v161 = vld [vmem:[%s1] sm:$0xff]
    %v162 = vld [vmem:[%s1 + $0x8] sm:$0xff]
    %v163 = vld [vmem:[%s1 + $0x10] sm:$0xff]
    %v164 = vld [vmem:[%s1 + $0x18] sm:$0xff]
    %166 = vset.pattern.permute.xlu0 0
    %167 = vperm.xlu0 %166, %v161
    %v168 = vpop.permute.xlu0 %167
    %171 = vset.pattern.permute.xlu0 0
    %172 = vperm.xlu0 %171, %v162
    %v173 = vpop.permute.xlu0 %172
    %176 = vset.pattern.permute.xlu0 0
    %177 = vperm.xlu0 %176, %v163
    %v178 = vpop.permute.xlu0 %177
    %181 = vset.pattern.permute.xlu0 0
    %182 = vperm.xlu0 %181, %v164
    %v183 = vpop.permute.xlu0 %182
    %v185 = vmul.f32 %v81, %v168
    %v186 = vmul.f32 %v113, %v168
    %v187 = vmul.f32 %v145, %v168
    %v188 = vmul.f32 %v82, %v173
    %v189 = vmul.f32 %v114, %v173
    %v190 = vmul.f32 %v146, %v173
    %v191 = vmul.f32 %v83, %v178
    %v192 = vmul.f32 %v115, %v178
    %v193 = vmul.f32 %v147, %v178
    %v194 = vmul.f32 %v84, %v183
    %v195 = vmul.f32 %v116, %v183
    %v196 = vmul.f32 %v148, %v183
    %v197 = vadd.f32 %v185, %v188
    %v198 = vadd.f32 %v197, %v191
    %v199 = vadd.f32 %v198, %v194
    %v200 = vrot.slane %v199, 4
    %v201 = vadd.f32 %v199, %v200
    %v202 = vrot.slane %v201, 2
    %v203 = vadd.f32 %v201, %v202
    %v204 = vrot.slane %v203, 1
    %v205 = vadd.f32 %v203, %v204
    %v206 = vadd.f32 %v186, %v189
    %v207 = vadd.f32 %v206, %v192
    %v208 = vadd.f32 %v207, %v195
    %v209 = vrot.slane %v208, 4
    %v210 = vadd.f32 %v208, %v209
    %v211 = vrot.slane %v210, 2
    %v212 = vadd.f32 %v210, %v211
    %v213 = vrot.slane %v212, 1
    %v214 = vadd.f32 %v212, %v213
    %v215 = vadd.f32 %v187, %v190
    %v216 = vadd.f32 %v215, %v193
    %v217 = vadd.f32 %v216, %v196
    %v218 = vrot.slane %v217, 4
    %v219 = vadd.f32 %v217, %v218
    %v220 = vrot.slane %v219, 2
    %v221 = vadd.f32 %v219, %v220
    %v222 = vrot.slane %v221, 1
    %v223 = vadd.f32 %v221, %v222
    %v224 = vld [vmem:[#allocation2] sm:$0x1]
    %226 = vset.pattern.permute.xlu0 0
    %227 = vperm.xlu0 %226, %v224
    %v228 = vpop.permute.xlu0 %227
    %v230 = vlaneseq
    %v231 = vshrl.u32 %v230, 7
    %v232 = vsub.s32 0, %v231
    %v233 = vrot.slane %v228, %v232
    %v234 = vadd.f32 %v205, %v233
    %v235 = vadd.f32 %v214, %v233
    %v236 = vadd.f32 %v223, %v233
    %v237 = vxor.u32 %v234, 2147483648
    %v238 = vxor.u32 %v235, 2147483648
    %v239 = vxor.u32 %v236, 2147483648
    %v240 = vmul.f32 %v237, 1.442695
    %v241 = vpow.pop %v240
    %v242 = vmul.f32 %v238, 1.442695
    %v243 = vpow.pop %v242
    %v244 = vmul.f32 %v239, 1.442695
    %v245 = vpow.pop %v244
    %v246 = vadd.f32 %v241, 1.0
    %v247 = vadd.f32 %v243, 1.0
    %v248 = vadd.f32 %v245, 1.0
    %v249 = vrcp.pop %v246
    %v250 = vmul.f32 1.0, %v249
    %v251 = vrcp.pop %v247
    %v252 = vmul.f32 1.0, %v251
    %v253 = vrcp.pop %v248
    %v254 = vmul.f32 1.0, %v253
    %v258 = vcombine.low %v250, %v252
    %v260 = vunpack.c.l.s4 1966171168
    %v261 = vunpack.c.0.s8 %v260
    %v262 = vlaneseq
    %v263 = vshrl.u32 %v262, 7
    %v264 = vsub.s32 %v261, %v263
    %v265 = vrot.slane %v258, %v264
    %v267 = vunpack.c.l.s4 1966171168
    %v268 = vunpack.c.0.s8 %v267
    %v269 = vlaneseq
    %v270 = vshrl.u32 %v269, 7
    %v271 = vsub.s32 %v268, %v270
    %v272 = vrot.slane %v254, %v271
    %v273 = vcombine.low %v265, %v272
    %v275 = vunpack.c.l.s4 1966171168
    %v276 = vunpack.c.0.s8 %v275
    %v277 = vlaneseq
    %v278 = vshrl.u32 %v277, 7
    %v279 = vsub.s32 %v276, %v278
    %v280 = vrot.slane %v273, %v279
    %v282 = vlaneseq
    %vm283 = vcmp.ge.s32.totalorder %v282, 0
    %vm284 = vcmp.lt.s32.totalorder %v282, 384
    %vm285 = vmand %vm283, %vm284
    %286 = vst.msk [vmem:[#allocation3] sm:$0x7] %vm285, %v280
    // Predicated region
    $region14: #{tpu_custom_call.1} parent=1 // pred_check
      _
    $region15: #{tpu_custom_call.1} parent=1 // pred_check_branch
      %288 = sbr.rel (0) target = $region17
    $region16: #{tpu_custom_call.1} parent=1 // pred_region
      %s290 = ssub.s32 48, 48
      %291 = vsyncadd [#allocation4], %s290
      %s293 = sshll.u32 [#allocation3], 4
      %s294 = int_to_ptr.vmem [resolvable:$true] %s293
      %296 = dma.vmem_to_hbm [thread:$0]  %s294, 48, %s3, [#allocation4]
    $region17: #{tpu_custom_call.1} parent=1 // pred_fallthru
      _
    // Predicated region
    $region18: #{tpu_custom_call.1} parent=1 // pred_check
      _
    $region19: #{tpu_custom_call.1} parent=1 // pred_check_branch
      %298 = sbr.rel (0) target = $region21
    $region20: #{tpu_custom_call.1} parent=1 // pred_region
      %299 = dma.done [#allocation4], 48
    $region21: #{tpu_custom_call.1} parent=1 // pred_fallthru
      _
    %300 = vsyncpa [#allocation4], 1

</llo_original>
